<compile_context>
chip_gen: v5e
topology: v5e:2x2
jax: 0.10.0
libtpu: 0.0.40
codegen_flags: <defaults>
</compile_context>

<pallas_src>
import jax
import jax.numpy as jnp
from jax.experimental import pallas as pl
from jax.experimental.pallas import tpu as pltpu

HIDDEN = 100


def _round_up(n, m):
    return ((n + m - 1) // m) * m


def affine_kernel(a_ref, b_ref, x_ref, o_ref):
    # y = a * x + b on a lane-dense (1, bt) tile; pure VPU, no MXU/XLU work.
    o_ref[...] = x_ref[...] * a_ref[0, 0] + b_ref[0, 0]


def _collapse_params(p):
    """Exactly fold the activation-free 4-layer chain into y = a_eff*x + b_eff."""
    f32 = jnp.float32
    w1, b1 = p["w1"].astype(f32), p["b1"].astype(f32)
    w2, b2 = p["w2"].astype(f32), p["b2"].astype(f32)
    w3, b3 = p["w3"].astype(f32), p["b3"].astype(f32)
    w4, b4 = p["w4"].astype(f32), p["b4"].astype(f32)
    a_eff = w1 @ w2 @ w3 @ w4                               # (1, 1)
    b_eff = ((b1 @ w2 + b2) @ w3 + b3) @ w4 + b4            # (1, 1)
    return a_eff.reshape(1, 1), b_eff.reshape(1, 1)


def dummy_module_forward(x, params, *, block_b=131072):
    """x: (B, 1) float32, params: dict of weights/biases. Returns (B, 1)."""
    B = x.shape[0]

    # Batch lives on the lane axis: (1, B_pad). Tile is a multiple of 128
    # lanes; cap it so the grid has >= 2 steps when B allows (v7x megacore).
    half = _round_up(pl.cdiv(B, 2), 128)
    bt = max(128, min(block_b, half))
    B_pad = _round_up(B, bt)

    x_lanes = x.reshape(1, B).astype(jnp.float32)
    if B_pad != B:
        x_lanes = jnp.pad(x_lanes, ((0, 0), (0, B_pad - B)))

    a_eff, b_eff = _collapse_params(params)

    grid_spec = pltpu.PrefetchScalarGridSpec(
        num_scalar_prefetch=0,
        grid=(B_pad // bt,),
        in_specs=[
            pl.BlockSpec(memory_space=pltpu.MemorySpace.SMEM),  # a_eff (1,1)
            pl.BlockSpec(memory_space=pltpu.MemorySpace.SMEM),  # b_eff (1,1)
            pl.BlockSpec((1, bt), lambda i: (0, i)),            # x tile
        ],
        out_specs=pl.BlockSpec((1, bt), lambda i: (0, i)),
    )

    out = pl.pallas_call(
        affine_kernel,
        out_shape=jax.ShapeDtypeStruct((1, B_pad), jnp.float32),
        grid_spec=grid_spec,
        compiler_params=pltpu.CompilerParams(
            dimension_semantics=("parallel",)),
    )(a_eff, b_eff, x_lanes)

    return out[0, :B].reshape(B, 1)


def init_params(key):
    """Deterministic parameter init (same shapes as the PyTorch module)."""
    ks = jax.random.split(key, 8)

    def lin(kw, kb, fan_in, fan_out):
        # Uniform(-1/sqrt(fan_in), 1/sqrt(fan_in)) like PyTorch default init.
        bound = 1.0 / jnp.sqrt(jnp.float32(fan_in))
        w = jax.random.uniform(kw, (fan_in, fan_out), jnp.float32, -bound, bound)
        b = jax.random.uniform(kb, (1, fan_out), jnp.float32, -bound, bound)
        return w, b

    w1, b1 = lin(ks[0], ks[1], 1, HIDDEN)
    w2, b2 = lin(ks[2], ks[3], HIDDEN, HIDDEN)
    w3, b3 = lin(ks[4], ks[5], HIDDEN, HIDDEN)
    w4, b4 = lin(ks[6], ks[7], HIDDEN, 1)
    return dict(w1=w1, b1=b1, w2=w2, b2=b2, w3=w3, b3=b3, w4=w4, b4=b4)


def reference_forward(x, p):
    h = x @ p["w1"] + p["b1"]
    h = h @ p["w2"] + p["b2"]
    h = h @ p["w3"] + p["b3"]
    return h @ p["w4"] + p["b4"]


if __name__ == "__main__":
    key = jax.random.PRNGKey(0)
    k_x, k_p = jax.random.split(key)

    B = 8
    x = jax.random.normal(k_x, (B, 1), jnp.float32)
    params = init_params(k_p)

    out = dummy_module_forward(x, params)
    out = jax.block_until_ready(out)

    ref = reference_forward(x, params)
    assert out.shape == (B, 1)
    assert jnp.allclose(out, ref, atol=1e-5, rtol=1e-5)

    print("KERNEL_OK")
</pallas_src>

<mosaic_0001>
module attributes {stable_mosaic.version = 11 : i64} {
  func.func @affine_kernel(%arg0: i32, %arg1: memref<1x1xf32, #tpu.memory_space<smem>>, %arg2: memref<1x1xf32, #tpu.memory_space<smem>>, %arg3: memref<1x128xf32, #tpu.memory_space<vmem>>, %arg4: memref<1x128xf32, #tpu.memory_space<vmem>>) attributes {dimension_semantics = [#tpu.dimension_semantics<parallel>], iteration_bounds = array<i64: 1>, scalar_prefetch = 0 : i64, scratch_operands = 0 : i64, tpu.core_type = #tpu.core_type<tc>, window_params = [{transform_indices = @transform_0, window_bounds = array<i64: 1, 1>}, {transform_indices = @transform_1, window_bounds = array<i64: 1, 1>}, {transform_indices = @transform_2, window_bounds = array<i64: 1, 128>}, {transform_indices = @transform_3, window_bounds = array<i64: 1, 128>}]} {
    %c0 = arith.constant 0 : index
    %c0_0 = arith.constant 0 : index
    %0 = vector.load %arg3[%c0, %c0_0] : memref<1x128xf32, #tpu.memory_space<vmem>>, vector<1x128xf32>
    %c0_1 = arith.constant 0 : index
    %c0_2 = arith.constant 0 : index
    %1 = memref.load %arg1[%c0_1, %c0_2] : memref<1x1xf32, #tpu.memory_space<smem>>
    %2 = vector.broadcast %1 : f32 to vector<1x128xf32>
    %3 = arith.mulf %0, %2 : vector<1x128xf32>
    %c0_3 = arith.constant 0 : index
    %c0_4 = arith.constant 0 : index
    %4 = memref.load %arg2[%c0_3, %c0_4] : memref<1x1xf32, #tpu.memory_space<smem>>
    %5 = vector.broadcast %4 : f32 to vector<1x128xf32>
    %6 = arith.addf %3, %5 : vector<1x128xf32>
    %c0_5 = arith.constant 0 : index
    %c0_6 = arith.constant 0 : index
    %7 = vector.load %arg4[%c0_5, %c0_6] : memref<1x128xf32, #tpu.memory_space<vmem>>, vector<1x128xf32>
    tpu.vector_store %arg4[%c0_5, %c0_6], %6 {strides = array<i32>} : memref<1x128xf32, #tpu.memory_space<vmem>>, vector<1x128xf32>,
    return
  }
  func.func @transform_0(%arg0: i32) -> (i32, i32) {
    %c0_i32 = arith.constant 0 : i32
    %c0_i32_0 = arith.constant 0 : i32
    %c0_i32_1 = arith.constant 0 : i32
    return %c0_i32, %c0_i32_0 : i32, i32
  }
  func.func @transform_1(%arg0: i32) -> (i32, i32) {
    %c0_i32 = arith.constant 0 : i32
    %c0_i32_0 = arith.constant 0 : i32
    %c0_i32_1 = arith.constant 0 : i32
    return %c0_i32, %c0_i32_0 : i32, i32
  }
  func.func @transform_2(%arg0: i32) -> (i32, i32) {
    %c0_i32 = arith.constant 0 : i32
    %c0_i32_0 = arith.constant 0 : i32
    return %c0_i32, %arg0 : i32, i32
  }
  func.func @transform_3(%arg0: i32) -> (i32, i32) {
    %c0_i32 = arith.constant 0 : i32
    %c0_i32_0 = arith.constant 0 : i32
    return %c0_i32, %arg0 : i32, i32
  }
}

</mosaic_0001>

<llo_original>
// kernel: tpu_custom_call.1
$region0: #{tpu_custom_call.1}
  #allocation0 [shape = 'u32[]', space=smem, size = 0x4, offset = 0x4, fixed_abs, tag = 'smem constant byte address 0x4 - core index']
  #allocation1 [shape = 'u32[72,128]{1,0:T(1,128)}', space=vmem, size = 0x9000, scoped, tag = 'internal scratch']
  #allocation2 [shape = 'f32[1,1]{1,0:T(1,128)S(6)}', space=smem, size = 0x200, scoped, tag = 'scoped memory for tpu_custom_call.1']
  #allocation3 [shape = 'f32[1,1]{1,0:T(1,128)S(6)}', space=smem, size = 0x200, scoped, tag = 'scoped memory for tpu_custom_call.1']
  %s0 = inlined_call_operand.<no memory space> [shape: f32[1,1], index: 0, kind: input, shape index: {}]
  %s1 = inlined_call_operand.<no memory space> [shape: f32[1,1], index: 1, kind: input, shape index: {}]
  %s2 = inlined_call_operand.vmem [shape: f32[1,128], index: 2, kind: input, shape index: {}]
  %s3 = inlined_call_operand.hbm [shape: f32[1,128], index: 3, kind: output, shape index: {}]
  %s4 = sld [smem:[#allocation0]]
  $region22: #{tpu_custom_call.1} parent=0
    _
  %s6 = ssub.s32 1, %s4
  %s7 = scalar_select 0, %s6, %s4
  %8 = sst [smem:[#allocation2]] %s0
  %9 = sst [smem:[#allocation3]] %s1
  $region1: #{tpu_custom_call.1} parent=0
    #allocation4 [shape = 'u8[512]{0}', space=vmem, size = 0x400, scoped, tag = 'output window, operand 0, single buffered']
    #allocation5 [shape = 's32[1]{0}', space=sflag, size = 0x4, scoped, tag = 'scoped memory for tpu_custom_call.1']
    %10 = vsyncpa [#allocation5], 0
    // Predicated region
    $region2: #{tpu_custom_call.1} parent=1 // pred_check
      _
    $region3: #{tpu_custom_call.1} parent=1 // pred_check_branch
      %12 = sbr.rel (0) target = $region5
    $region4: #{tpu_custom_call.1} parent=1 // pred_region
      _
    $region5: #{tpu_custom_call.1} parent=1 // pred_fallthru
      _
    // Predicated region
    $region6: #{tpu_custom_call.1} parent=1 // pred_check
      _
    $region7: #{tpu_custom_call.1} parent=1 // pred_check_branch
      %14 = sbr.rel (0) target = $region9
    $region8: #{tpu_custom_call.1} parent=1 // pred_region
      _
    $region9: #{tpu_custom_call.1} parent=1 // pred_fallthru
      _
    // Predicated region
    $region10: #{tpu_custom_call.1} parent=1 // pred_check
      _
    $region11: #{tpu_custom_call.1} parent=1 // pred_check_branch
      %16 = sbr.rel (0) target = $region13
    $region12: #{tpu_custom_call.1} parent=1 // pred_region
      _
    $region13: #{tpu_custom_call.1} parent=1 // pred_fallthru
      _
    %v17 = vld [vmem:[%s2] sm:$0x1]
    %s18 = sld [smem:[#allocation2]]
    %v19 = vstv %s18
    %v20 = vmul.f32 %v17, %v19
    %s21 = sld [smem:[#allocation3]]
    %v22 = vstv %s21
    %v23 = vadd.f32 %v20, %v22
    %24 = vst [vmem:[#allocation4] sm:$0x1] %v23
    // Predicated region
    $region14: #{tpu_custom_call.1} parent=1 // pred_check
      _
    $region15: #{tpu_custom_call.1} parent=1 // pred_check_branch
      %26 = sbr.rel (0) target = $region17
    $region16: #{tpu_custom_call.1} parent=1 // pred_region
      %28 = vsyncadd [#allocation5], 0
      %s30 = sshll.u32 [#allocation4], 4
      %s31 = int_to_ptr.vmem [resolvable:$true] %s30
      %s32 = sshll.u32 %s3, 4
      %s33 = int_to_ptr.hbm [resolvable:$true] %s32
      %35 = dma.vmem_to_hbm [thread:$0]  %s31, 16, %s33, [#allocation5]
    $region17: #{tpu_custom_call.1} parent=1 // pred_fallthru
      _
    // Predicated region
    $region18: #{tpu_custom_call.1} parent=1 // pred_check
      _
    $region19: #{tpu_custom_call.1} parent=1 // pred_check_branch
      %37 = sbr.rel (0) target = $region21
    $region20: #{tpu_custom_call.1} parent=1 // pred_region
      %39 = dma.done [#allocation5], 16
    $region21: #{tpu_custom_call.1} parent=1 // pred_fallthru
      _
    %40 = vsyncpa [#allocation5], 1

</llo_original>
